<compile_context>
chip_gen: v7x
topology: tpu7x:2x2x1
jax: 0.10.0
libtpu: 0.0.40
codegen_flags: <defaults>
</compile_context>

<pallas_src>
import jax
import jax.numpy as jnp
from jax.experimental import pallas as pl
from jax.experimental.pallas import tpu as pltpu

N_EMBD = 64       # n_embd
BLOCK_SIZE = 8    # block_size (max T, tril size)
HEAD_SIZE = 16

_NEG_BIG = -1e30  # additive mask value (avoids -inf arithmetic entirely)


def head_kernel(x_ref, w_ref, bias_ref, o_ref):
    # x_ref:    (Bb*T, C) f32   (cast to bf16 here, not in HBM)
    # w_ref:    (C, 3H)   bf16  (Q part pre-scaled by C**-0.5), resident
    # bias_ref: (T, T)    f32   additive causal bias (0 / -1e30), resident
    # o_ref:    (Bb, T, H)      same dtype as the caller's x
    Bb, T, H = o_ref.shape

    # Single fused QKV projection: bf16 operands, f32 accumulation on the MXU.
    x_bf16 = x_ref[...].astype(jnp.bfloat16)
    kqv = jnp.dot(x_bf16, w_ref[...],
                  preferred_element_type=jnp.float32)          # (Bb*T, 3H)
    kqv = kqv.reshape(Bb, T, 3 * H)                            # sublane-clean split
    k = kqv[:, :, 0:H]
    q = kqv[:, :, H:2 * H]        # already scaled by C**-0.5 (folded into W_q)
    v = kqv[:, :, 2 * H:3 * H]

    # Scores: contract on the head dim, batched over Bb (no explicit k.T).
    wei = jax.lax.dot_general(
        q, k, (((2,), (2,)), ((0,), (0,))),
        preferred_element_type=jnp.float32)                    # (Bb, T, T)

    # Causal mask as a single additive bias (precomputed once in the wrapper).
    wei = wei + bias_ref[...][None, :, :]

    # Numerically stable softmax, kept in f32 (VPU/EUP).
    wei = wei - jnp.max(wei, axis=-1, keepdims=True)
    ew = jnp.exp(wei)
    p = ew * pl.reciprocal(jnp.sum(ew, axis=-1, keepdims=True), approx=True)

    # dropout(p=0.0) is the identity.
    out = jax.lax.dot_general(
        p, v, (((2,), (1,)), ((0,), (0,))),
        preferred_element_type=jnp.float32)                    # (Bb, T, H)
    o_ref[...] = out.astype(o_ref.dtype)


def _pick_batch_block(B, T, max_rows=512):
    """Largest divisor of B with batch_block*T <= max_rows.

    - Tiny B (e.g. B=2) collapses to a single grid step (overhead-bound regime).
    - Large B yields 128-512 rows per step: amortizes the ~600-cycle step
      overhead, fills the MXU row dimension, keeps vreg pressure bounded, and
      always divides B so there are never partial/garbage blocks.
    """
    cap = max(1, max_rows // T)
    best = 1
    for d in range(1, B + 1):
        if B % d == 0 and d <= cap:
            best = d
    return best


def head_forward(x, wk, wq, wv, *, batch_block=None):
    """x: (B, T, C); wk/wq/wv: (C, H). Returns (B, T, H)."""
    B, T, C = x.shape
    H = wk.shape[1]
    scale = C ** (-0.5)

    # Fuse K|Q|V into one (C, 3H) bf16 weight; fold the score scale into Q.
    w_fused = jnp.concatenate([wk, wq * scale, wv], axis=1).astype(jnp.bfloat16)

    # Additive causal bias: 0 where allowed, -1e30 where masked.
    tril = jnp.tril(jnp.ones((T, T), dtype=bool))
    bias = jnp.where(tril, 0.0, _NEG_BIG).astype(jnp.float32)

    # Metadata-only flatten; NO bf16 materialization in HBM (cast happens
    # inside the kernel).
    x_flat = x.reshape(B * T, C)

    if batch_block is None:
        batch_block = _pick_batch_block(B, T)
    assert B % batch_block == 0, "batch_block must divide B"
    nb = B // batch_block

    return pl.pallas_call(
        head_kernel,
        out_shape=jax.ShapeDtypeStruct((B, T, H), x.dtype),
        grid_spec=pltpu.PrefetchScalarGridSpec(
            num_scalar_prefetch=0,
            grid=(nb,),
            in_specs=[
                pl.BlockSpec((batch_block * T, C), lambda b: (b, 0)),
                pl.BlockSpec((C, 3 * H), lambda b: (0, 0)),  # resident weight
                pl.BlockSpec((T, T), lambda b: (0, 0)),      # resident bias
            ],
            out_specs=pl.BlockSpec((batch_block, T, H), lambda b: (b, 0, 0)),
        ),
        compiler_params=pltpu.CompilerParams(
            dimension_semantics=("parallel",)),
    )(x_flat, w_fused, bias)


def head_reference(x, wk, wq, wv):
    """Pure-JAX f32 reference mirroring the PyTorch forward."""
    B, T, C = x.shape
    k = x @ wk
    q = x @ wq
    v = x @ wv
    wei = (q @ jnp.swapaxes(k, -2, -1)) * C ** (-0.5)
    tril = jnp.tril(jnp.ones((T, T), dtype=bool))
    wei = jnp.where(tril, wei, -jnp.inf)
    wei = jax.nn.softmax(wei, axis=-1)
    return wei @ v


if __name__ == "__main__":
    key = jax.random.PRNGKey(0)
    kx, kk, kq, kv = jax.random.split(key, 4)

    B, T, C, H = 2, BLOCK_SIZE, N_EMBD, HEAD_SIZE
    x = jax.random.normal(kx, (B, T, C), dtype=jnp.float32)

    # Deterministic nn.Linear-style init (uniform in +/- 1/sqrt(fan_in)),
    # stored transposed as (C, H).
    bound = 1.0 / (C ** 0.5)
    wk = jax.random.uniform(kk, (C, H), jnp.float32, -bound, bound)
    wq = jax.random.uniform(kq, (C, H), jnp.float32, -bound, bound)
    wv = jax.random.uniform(kv, (C, H), jnp.float32, -bound, bound)

    out = head_forward(x, wk, wq, wv)
    jax.block_until_ready(out)

    ref = head_reference(x, wk, wq, wv)
    assert out.shape == (B, T, H)
    # Projection runs with bf16 operands (f32 accumulation) and an approx
    # reciprocal in the softmax, so compare with a tolerance covering both.
    assert jnp.allclose(out, ref, atol=2e-2, rtol=2e-2), \
        float(jnp.max(jnp.abs(out - ref)))
    print("KERNEL_OK")
</pallas_src>

<mosaic_0001>
module attributes {stable_mosaic.version = 11 : i64} {
  func.func @head_kernel(%arg0: i32, %arg1: memref<16x64xf32, #tpu.memory_space<vmem>>, %arg2: memref<64x48xbf16, #tpu.memory_space<vmem>>, %arg3: memref<8x8xf32, #tpu.memory_space<vmem>>, %arg4: memref<2x8x16xf32, #tpu.memory_space<vmem>>) attributes {dimension_semantics = [#tpu.dimension_semantics<parallel>], iteration_bounds = array<i64: 1>, scalar_prefetch = 0 : i64, scratch_operands = 0 : i64, tpu.core_type = #tpu.core_type<tc>, window_params = [{transform_indices = @transform_0, window_bounds = array<i64: 16, 64>}, {pipeline_mode = #tpu.pipeline_mode<synchronous>, transform_indices = @transform_1, window_bounds = array<i64: 64, 48>}, {pipeline_mode = #tpu.pipeline_mode<synchronous>, transform_indices = @transform_2, window_bounds = array<i64: 8, 8>}, {transform_indices = @transform_3, window_bounds = array<i64: 2, 8, 16>}]} {
    %c0 = arith.constant 0 : index
    %c0_0 = arith.constant 0 : index
    %0 = vector.load %arg1[%c0, %c0_0] : memref<16x64xf32, #tpu.memory_space<vmem>>, vector<16x64xf32>
    %1 = arith.truncf %0 : vector<16x64xf32> to vector<16x64xbf16>
    %c0_1 = arith.constant 0 : index
    %c0_2 = arith.constant 0 : index
    %2 = vector.load %arg2[%c0_1, %c0_2] : memref<64x48xbf16, #tpu.memory_space<vmem>>, vector<64x48xbf16>
    %cst = arith.constant dense<0.000000e+00> : vector<16x48xf32>
    %3 = tpu.matmul %1, %2, %cst {dimension_numbers = #tpu.dot_dimension_numbers<[1], [0], [0], [1], [0, 0, 1, 1], [], []>} : vector<16x64xbf16>, vector<64x48xbf16>, vector<16x48xf32> -> vector<16x48xf32>
    %4 = vector.shape_cast %3 : vector<16x48xf32> to vector<2x8x48xf32>
    %5 = vector.extract_strided_slice %4 {offsets = [0, 0, 0], sizes = [2, 8, 16], strides = [1, 1, 1]} : vector<2x8x48xf32> to vector<2x8x16xf32>
    %6 = vector.extract_strided_slice %4 {offsets = [0, 0, 16], sizes = [2, 8, 16], strides = [1, 1, 1]} : vector<2x8x48xf32> to vector<2x8x16xf32>
    %7 = vector.extract_strided_slice %4 {offsets = [0, 0, 32], sizes = [2, 8, 16], strides = [1, 1, 1]} : vector<2x8x48xf32> to vector<2x8x16xf32>
    %cst_3 = arith.constant dense<0.000000e+00> : vector<2x8x8xf32>
    %8 = tpu.matmul %6, %5, %cst_3 {dimension_numbers = #tpu.dot_dimension_numbers<[2], [2], [1], [1], [0, 0, 0, 1, 1, 1], [0], [0]>} : vector<2x8x16xf32>, vector<2x8x16xf32>, vector<2x8x8xf32> -> vector<2x8x8xf32>
    %c0_4 = arith.constant 0 : index
    %c0_5 = arith.constant 0 : index
    %9 = vector.load %arg3[%c0_4, %c0_5] : memref<8x8xf32, #tpu.memory_space<vmem>>, vector<8x8xf32>
    %10 = vector.shape_cast %9 : vector<8x8xf32> to vector<1x8x8xf32>
    %11 = vector.broadcast %10 : vector<1x8x8xf32> to vector<2x8x8xf32>
    %12 = arith.addf %8, %11 : vector<2x8x8xf32>
    %cst_6 = arith.constant dense<0xFF800000> : vector<2x8xf32>
    %13 = vector.multi_reduction <maximumf>, %12, %cst_6 [2] : vector<2x8x8xf32> to vector<2x8xf32>
    %14 = vector.shape_cast %13 : vector<2x8xf32> to vector<2x8x1xf32>
    %15 = vector.broadcast %14 : vector<2x8x1xf32> to vector<2x8x8xf32>
    %16 = arith.subf %12, %15 : vector<2x8x8xf32>
    %17 = math.exp %16 : vector<2x8x8xf32>
    %cst_7 = arith.constant dense<0.000000e+00> : vector<2x8xf32>
    %18 = vector.multi_reduction <add>, %17, %cst_7 [2] : vector<2x8x8xf32> to vector<2x8xf32>
    %19 = vector.shape_cast %18 : vector<2x8xf32> to vector<2x8x1xf32>
    %20 = tpu.reciprocal %19 {approx = true} : vector<2x8x1xf32> -> vector<2x8x1xf32>
    %21 = vector.broadcast %20 : vector<2x8x1xf32> to vector<2x8x8xf32>
    %22 = arith.mulf %17, %21 : vector<2x8x8xf32>
    %cst_8 = arith.constant dense<0.000000e+00> : vector<2x8x16xf32>
    %23 = tpu.matmul %22, %7, %cst_8 {dimension_numbers = #tpu.dot_dimension_numbers<[2], [1], [1], [2], [0, 0, 0, 1, 1, 2], [0], [0]>} : vector<2x8x8xf32>, vector<2x8x16xf32>, vector<2x8x16xf32> -> vector<2x8x16xf32>
    %c0_9 = arith.constant 0 : index
    %c0_10 = arith.constant 0 : index
    %c0_11 = arith.constant 0 : index
    %24 = vector.load %arg4[%c0_9, %c0_10, %c0_11] : memref<2x8x16xf32, #tpu.memory_space<vmem>>, vector<2x8x16xf32>
    tpu.vector_store %arg4[%c0_9, %c0_10, %c0_11], %23 {strides = array<i32>} : memref<2x8x16xf32, #tpu.memory_space<vmem>>, vector<2x8x16xf32>,
    return
  }
  func.func @transform_0(%arg0: i32) -> (i32, i32) {
    %c0_i32 = arith.constant 0 : i32
    %c0_i32_0 = arith.constant 0 : i32
    return %arg0, %c0_i32 : i32, i32
  }
  func.func @transform_1(%arg0: i32) -> (i32, i32) {
    %c0_i32 = arith.constant 0 : i32
    %c0_i32_0 = arith.constant 0 : i32
    %c0_i32_1 = arith.constant 0 : i32
    return %c0_i32, %c0_i32_0 : i32, i32
  }
  func.func @transform_2(%arg0: i32) -> (i32, i32) {
    %c0_i32 = arith.constant 0 : i32
    %c0_i32_0 = arith.constant 0 : i32
    %c0_i32_1 = arith.constant 0 : i32
    return %c0_i32, %c0_i32_0 : i32, i32
  }
  func.func @transform_3(%arg0: i32) -> (i32, i32, i32) {
    %c0_i32 = arith.constant 0 : i32
    %c0_i32_0 = arith.constant 0 : i32
    %c0_i32_1 = arith.constant 0 : i32
    return %arg0, %c0_i32, %c0_i32_0 : i32, i32, i32
  }
}

</mosaic_0001>

<llo_original>
// kernel: tpu_custom_call.1
$region0: #{tpu_custom_call.1}
  #allocation0 [shape = 'u32[]', space=smem, size = 0x4, offset = 0x4, fixed_abs, tag = 'smem constant byte address 0x4 - core index']
  #allocation1 [shape = 'u32[144,128]{1,0:T(1,128)}', space=vmem, size = 0x12000, scoped, tag = 'internal scratch']
  %s0 = inlined_call_operand.vmem [shape: f32[16,64], index: 0, kind: input, shape index: {}]
  %s1 = inlined_call_operand.vmem [shape: bf16[64,48], index: 1, kind: input, shape index: {}]
  %s2 = inlined_call_operand.vmem [shape: f32[8,8], index: 2, kind: input, shape index: {}]
  %s3 = inlined_call_operand.hbm [shape: f32[2,8,16], index: 3, kind: output, shape index: {}]
  %s4 = sld [smem:[#allocation0]]
  $region22: #{tpu_custom_call.1} parent=0
    _
  %s6 = ssub.s32 1, %s4
  %s7 = scalar_select 0, %s6, %s4
  $region1: #{tpu_custom_call.1} parent=0
    #allocation2 [shape = 'u8[8192]{0}', space=vmem, size = 0x2000, scoped, tag = 'output window, operand 0, single buffered']
    #allocation3 [shape = 's32[1]{0}', space=sflag, size = 0x4, scoped, tag = 'scoped memory for tpu_custom_call.1']
    %8 = vsyncpa [#allocation3], 0
    // Predicated region
    $region2: #{tpu_custom_call.1} parent=1 // pred_check
      _
    $region3: #{tpu_custom_call.1} parent=1 // pred_check_branch
      %10 = sbr.rel (0) target = $region5
    $region4: #{tpu_custom_call.1} parent=1 // pred_region
      _
    $region5: #{tpu_custom_call.1} parent=1 // pred_fallthru
      _
    // Predicated region
    $region6: #{tpu_custom_call.1} parent=1 // pred_check
      _
    $region7: #{tpu_custom_call.1} parent=1 // pred_check_branch
      %12 = sbr.rel (0) target = $region9
    $region8: #{tpu_custom_call.1} parent=1 // pred_region
      _
    $region9: #{tpu_custom_call.1} parent=1 // pred_fallthru
      _
    // Predicated region
    $region10: #{tpu_custom_call.1} parent=1 // pred_check
      _
    $region11: #{tpu_custom_call.1} parent=1 // pred_check_branch
      %14 = sbr.rel (0) target = $region13
    $region12: #{tpu_custom_call.1} parent=1 // pred_region
      _
    $region13: #{tpu_custom_call.1} parent=1 // pred_fallthru
      _
    %v16 = vld [vmem:[%s0] sm:$0xff]
    %v17 = vld [vmem:[%s0 + $0x8] sm:$0xff]
    %v18 = vpack.c.bf16 %v17, %v16
    %v19 = vld [vmem:[%s1] sm:$0xf]
    %v20 = vld [vmem:[%s1 + $0x4] sm:$0xf]
    %v21 = vld [vmem:[%s1 + $0x8] sm:$0xf]
    %v22 = vld [vmem:[%s1 + $0xc] sm:$0xf]
    %v23 = vld [vmem:[%s1 + $0x10] sm:$0xf]
    %v24 = vld [vmem:[%s1 + $0x14] sm:$0xf]
    %v25 = vld [vmem:[%s1 + $0x18] sm:$0xf]
    %v26 = vld [vmem:[%s1 + $0x1c] sm:$0xf]
    %v35 = vunpack.c.l.b16 %v19
    %v36 = vunpack.c.l.b16 %v20
    %v37 = vunpack.c.l.b16 %v21
    %v38 = vunpack.c.l.b16 %v22
    %v39 = vunpack.c.l.b16 %v23
    %v40 = vunpack.c.l.b16 %v24
    %v41 = vunpack.c.l.b16 %v25
    %v42 = vunpack.c.l.b16 %v26
    %v43 = vpack.c.b16 %v36, %v35
    %v44 = vpack.c.b16 %v38, %v37
    %v45 = vpack.c.b16 %v40, %v39
    %v46 = vpack.c.b16 %v42, %v41
    %vm51 = vcmask 523264
    %v53 = vsel %vm51, %v18, 0
    %55 = vmatprep.subr.bf16.mxu0 0
    %56 = vmatpush1.bf16.msra.mxu0 %v43
    %57 = vmatprep.subr.bf16.mxu0 0
    %58 = vmatpush1.bf16.msra.mxu0 %v44
    %59 = vmatprep.subr.bf16.mxu0 0
    %60 = vmatpush1.bf16.msra.mxu0 %v45
    %61 = vmatprep.subr.bf16.mxu0 0
    %62 = vmatpush1.bf16.msra.mxu0 %v46
    %63 = vmatprep.subr.bf16.mxu0 0
    %64 = vmatpush1.bf16.msra.mxu0 0
    %65 = vmatprep.subr.bf16.mxu0 0
    %66 = vmatpush1.bf16.msra.mxu0 0
    %67 = vmatprep.subr.bf16.mxu0 0
    %68 = vmatpush1.bf16.msra.mxu0 0
    %69 = vmatprep.subr.bf16.mxu0 0
    %70 = vmatpush1.bf16.msra.mxu0 0
    %71 = vmatprep.subr.bf16.mxu0 0
    %72 = vmatpush1.bf16.msra.mxu0 0
    %73 = vmatprep.subr.bf16.mxu0 0
    %74 = vmatpush1.bf16.msra.mxu0 0
    %75 = vmatprep.subr.bf16.mxu0 0
    %76 = vmatpush1.bf16.msra.mxu0 0
    %77 = vmatprep.subr.bf16.mxu0 0
    %78 = vmatpush1.bf16.msra.mxu0 0
    %79 = vmatprep.subr.bf16.mxu0 0
    %80 = vmatpush1.bf16.msra.mxu0 0
    %81 = vmatprep.subr.bf16.mxu0 0
    %82 = vmatpush1.bf16.msra.mxu0 0
    %83 = vmatprep.subr.bf16.mxu0 0
    %84 = vmatpush1.bf16.msra.mxu0 0
    %85 = vmatprep.subr.bf16.mxu0 0
    %86 = vmatpush1.bf16.msra.mxu0 0
    %87 = vmatprep.mubr.bf16.mxu0 0
    %88 = vmatmul.mubr.bf16.gmra.mrb[0].mxu0 %v53
    %v89 = vpop.f32.mrb[0].mxu0
    %v90 = vadd.f32 0.0, %v89
    %v91 = vpop.f32.mrb[0].mxu0
    %v92 = vpop.f32.mrb[0].mxu0
    %v93 = vadd.f32 0.0, %v92
    %v94 = vpop.f32.mrb[0].mxu0
    %95 = vdwg.mxu0
    %v96 = vld [vmem:[%s2] sm:$0xff]
    %98 = vrot.lane.b32.xlu0 %v90, 112
    %v99 = vpop.permute.xlu0 %98
    %vm100 = vcmask 130048
    %v101 = vsel %vm100, %v99, 0
    %v103 = vsel %vm100, %v90, 0
    %105 = vmatprep.subr.mxu0 0.0
    %106 = vmatpush1.xpose.msra.mxu0 %v103
    %107 = vmatprep.subr.mxu0 0.0
    %108 = vmatpush1.xpose.msra.mxu0 0.0
    %109 = vmatprep.subr.mxu0 0.0
    %110 = vmatpush1.xpose.msra.mxu0 0.0
    %111 = vmatprep.subr.mxu0 0.0
    %112 = vmatpush1.xpose.msra.mxu0 0.0
    %113 = vmatprep.subr.mxu0 0.0
    %114 = vmatpush1.xpose.msra.mxu0 0.0
    %115 = vmatprep.subr.mxu0 0.0
    %116 = vmatpush1.xpose.msra.mxu0 0.0
    %117 = vmatprep.subr.mxu0 0.0
    %118 = vmatpush1.xpose.msra.mxu0 0.0
    %119 = vmatprep.subr.mxu0 0.0
    %120 = vmatpush1.xpose.msra.mxu0 0.0
    %121 = vmatprep.subr.mxu0 0.0
    %122 = vmatpush1.xpose.msra.mxu0 0.0
    %123 = vmatprep.subr.mxu0 0.0
    %124 = vmatpush1.xpose.msra.mxu0 0.0
    %125 = vmatprep.subr.mxu0 0.0
    %126 = vmatpush1.xpose.msra.mxu0 0.0
    %127 = vmatprep.subr.mxu0 0.0
    %128 = vmatpush1.xpose.msra.mxu0 0.0
    %129 = vmatprep.subr.mxu0 0.0
    %130 = vmatpush1.xpose.msra.mxu0 0.0
    %131 = vmatprep.subr.mxu0 0.0
    %132 = vmatpush1.xpose.msra.mxu0 0.0
    %133 = vmatprep.subr.mxu0 0.0
    %134 = vmatpush1.xpose.msra.mxu0 0.0
    %135 = vmatprep.subr.mxu0 0.0
    %136 = vmatpush1.xpose.msra.mxu0 0.0
    %137 = vmatprep.subr.mxu0 0.0
    %138 = vmatpush1.xpose.msra.mxu0 0.0
    %139 = vmatprep.subr.mxu0 0.0
    %140 = vmatpush1.xpose.msra.mxu0 0.0
    %141 = vmatprep.subr.mxu0 0.0
    %142 = vmatpush1.xpose.msra.mxu0 0.0
    %143 = vmatprep.subr.mxu0 0.0
    %144 = vmatpush1.xpose.msra.mxu0 0.0
    %145 = vmatprep.subr.mxu0 0.0
    %146 = vmatpush1.xpose.msra.mxu0 0.0
    %147 = vmatprep.subr.mxu0 0.0
    %148 = vmatpush1.xpose.msra.mxu0 0.0
    %149 = vmatprep.subr.mxu0 0.0
    %150 = vmatpush1.xpose.msra.mxu0 0.0
    %151 = vmatprep.subr.mxu0 0.0
    %152 = vmatpush1.xpose.msra.mxu0 0.0
    %153 = vmatprep.subr.mxu0 0.0
    %154 = vmatpush1.xpose.msra.mxu0 0.0
    %155 = vmatprep.subr.mxu0 0.0
    %156 = vmatpush1.xpose.msra.mxu0 0.0
    %157 = vmatprep.subr.mxu0 0.0
    %158 = vmatpush1.xpose.msra.mxu0 0.0
    %159 = vmatprep.subr.mxu0 0.0
    %160 = vmatpush1.xpose.msra.mxu0 0.0
    %161 = vmatprep.subr.mxu0 0.0
    %162 = vmatpush1.xpose.msra.mxu0 0.0
    %163 = vmatprep.subr.mxu0 0.0
    %164 = vmatpush1.xpose.msra.mxu0 0.0
    %165 = vmatprep.subr.mxu0 0.0
    %166 = vmatpush1.xpose.msra.mxu0 0.0
    %167 = vmatprep.subr.mxu0 0.0
    %168 = vmatpush1.xpose.msra.mxu0 0.0
    %169 = vmatprep.mubr.f32.mxu0 0.0
    %170 = vmatmul.mubr.f32.gmra.mrb[0].mxu0 %v101
    %v171 = vpop.f32.mrb[0].mxu0
    %v172 = vadd.f32 %v96, %v171
    %v173 = vpop.f32.mrb[0].mxu0
    %174 = vdwg.mxu0
    %176 = vrot.lane.b32.xlu0 %v93, 112
    %v177 = vpop.permute.xlu0 %176
    %v178 = vsel %vm100, %v177, 0
    %v180 = vsel %vm100, %v93, 0
    %182 = vmatprep.subr.mxu0 0.0
    %183 = vmatpush1.xpose.msra.mxu0 %v180
    %184 = vmatprep.subr.mxu0 0.0
    %185 = vmatpush1.xpose.msra.mxu0 0.0
    %186 = vmatprep.subr.mxu0 0.0
    %187 = vmatpush1.xpose.msra.mxu0 0.0
    %188 = vmatprep.subr.mxu0 0.0
    %189 = vmatpush1.xpose.msra.mxu0 0.0
    %190 = vmatprep.subr.mxu0 0.0
    %191 = vmatpush1.xpose.msra.mxu0 0.0
    %192 = vmatprep.subr.mxu0 0.0
    %193 = vmatpush1.xpose.msra.mxu0 0.0
    %194 = vmatprep.subr.mxu0 0.0
    %195 = vmatpush1.xpose.msra.mxu0 0.0
    %196 = vmatprep.subr.mxu0 0.0
    %197 = vmatpush1.xpose.msra.mxu0 0.0
    %198 = vmatprep.subr.mxu0 0.0
    %199 = vmatpush1.xpose.msra.mxu0 0.0
    %200 = vmatprep.subr.mxu0 0.0
    %201 = vmatpush1.xpose.msra.mxu0 0.0
    %202 = vmatprep.subr.mxu0 0.0
    %203 = vmatpush1.xpose.msra.mxu0 0.0
    %204 = vmatprep.subr.mxu0 0.0
    %205 = vmatpush1.xpose.msra.mxu0 0.0
    %206 = vmatprep.subr.mxu0 0.0
    %207 = vmatpush1.xpose.msra.mxu0 0.0
    %208 = vmatprep.subr.mxu0 0.0
    %209 = vmatpush1.xpose.msra.mxu0 0.0
    %210 = vmatprep.subr.mxu0 0.0
    %211 = vmatpush1.xpose.msra.mxu0 0.0
    %212 = vmatprep.subr.mxu0 0.0
    %213 = vmatpush1.xpose.msra.mxu0 0.0
    %214 = vmatprep.subr.mxu0 0.0
    %215 = vmatpush1.xpose.msra.mxu0 0.0
    %216 = vmatprep.subr.mxu0 0.0
    %217 = vmatpush1.xpose.msra.mxu0 0.0
    %218 = vmatprep.subr.mxu0 0.0
    %219 = vmatpush1.xpose.msra.mxu0 0.0
    %220 = vmatprep.subr.mxu0 0.0
    %221 = vmatpush1.xpose.msra.mxu0 0.0
    %222 = vmatprep.subr.mxu0 0.0
    %223 = vmatpush1.xpose.msra.mxu0 0.0
    %224 = vmatprep.subr.mxu0 0.0
    %225 = vmatpush1.xpose.msra.mxu0 0.0
    %226 = vmatprep.subr.mxu0 0.0
    %227 = vmatpush1.xpose.msra.mxu0 0.0
    %228 = vmatprep.subr.mxu0 0.0
    %229 = vmatpush1.xpose.msra.mxu0 0.0
    %230 = vmatprep.subr.mxu0 0.0
    %231 = vmatpush1.xpose.msra.mxu0 0.0
    %232 = vmatprep.subr.mxu0 0.0
    %233 = vmatpush1.xpose.msra.mxu0 0.0
    %234 = vmatprep.subr.mxu0 0.0
    %235 = vmatpush1.xpose.msra.mxu0 0.0
    %236 = vmatprep.subr.mxu0 0.0
    %237 = vmatpush1.xpose.msra.mxu0 0.0
    %238 = vmatprep.subr.mxu0 0.0
    %239 = vmatpush1.xpose.msra.mxu0 0.0
    %240 = vmatprep.subr.mxu0 0.0
    %241 = vmatpush1.xpose.msra.mxu0 0.0
    %242 = vmatprep.subr.mxu0 0.0
    %243 = vmatpush1.xpose.msra.mxu0 0.0
    %244 = vmatprep.subr.mxu0 0.0
    %245 = vmatpush1.xpose.msra.mxu0 0.0
    %246 = vmatprep.mubr.f32.mxu0 0.0
    %247 = vmatmul.mubr.f32.gmra.mrb[0].mxu0 %v178
    %v248 = vpop.f32.mrb[0].mxu0
    %v249 = vadd.f32 %v96, %v248
    %v250 = vpop.f32.mrb[0].mxu0
    %251 = vdwg.mxu0
    %vm252 = vcmask 64512
    %v253 = vsel %vm252, %v172, -inf
    %254 = vmax.xlane.f32.xlu0 %v253
    %v255 = vpop.xlane.xlu0 %254
    %v256 = vsel %vm252, %v249, -inf
    %257 = vmax.xlane.f32.xlu0 %v256
    %v258 = vpop.xlane.xlu0 %257
    %v259 = vsub.f32 %v172, %v255
    %v260 = vsub.f32 %v249, %v258
    %v261 = vmul.f32 %v259, 1.442695
    %v262 = vpow.pop %v261
    %v263 = vmul.f32 %v260, 1.442695
    %v264 = vpow.pop %v263
    %v265 = vsel %vm252, %v262, 0.0
    %266 = vadd.xlane.f32.xlu0 %v265
    %v267 = vpop.xlane.xlu0 %266
    %v268 = vsel %vm252, %v264, 0.0
    %269 = vadd.xlane.f32.xlu0 %v268
    %v270 = vpop.xlane.xlu0 %269
    %v271 = vrcp.pop %v267
    %v272 = vrcp.pop %v270
    %v273 = vmul.f32 %v262, %v271
    %v274 = vmul.f32 %v264, %v272
    %275 = vrot.lane.b32.xlu0 %v90, 96
    %v276 = vpop.permute.xlu0 %275
    %v279 = vsel %vm252, %v273, 0
    %281 = vmatprep.subr.mxu0 0.0
    %282 = vmatpush1.msra.mxu0 %v276
    %283 = vmatprep.subr.mxu0 0.0
    %284 = vmatpush1.msra.mxu0 0.0
    %285 = vmatprep.subr.mxu0 0.0
    %286 = vmatpush1.msra.mxu0 0.0
    %287 = vmatprep.subr.mxu0 0.0
    %288 = vmatpush1.msra.mxu0 0.0
    %289 = vmatprep.subr.mxu0 0.0
    %290 = vmatpush1.msra.mxu0 0.0
    %291 = vmatprep.subr.mxu0 0.0
    %292 = vmatpush1.msra.mxu0 0.0
    %293 = vmatprep.subr.mxu0 0.0
    %294 = vmatpush1.msra.mxu0 0.0
    %295 = vmatprep.subr.mxu0 0.0
    %296 = vmatpush1.msra.mxu0 0.0
    %297 = vmatprep.subr.mxu0 0.0
    %298 = vmatpush1.msra.mxu0 0.0
    %299 = vmatprep.subr.mxu0 0.0
    %300 = vmatpush1.msra.mxu0 0.0
    %301 = vmatprep.subr.mxu0 0.0
    %302 = vmatpush1.msra.mxu0 0.0
    %303 = vmatprep.subr.mxu0 0.0
    %304 = vmatpush1.msra.mxu0 0.0
    %305 = vmatprep.subr.mxu0 0.0
    %306 = vmatpush1.msra.mxu0 0.0
    %307 = vmatprep.subr.mxu0 0.0
    %308 = vmatpush1.msra.mxu0 0.0
    %309 = vmatprep.subr.mxu0 0.0
    %310 = vmatpush1.msra.mxu0 0.0
    %311 = vmatprep.subr.mxu0 0.0
    %312 = vmatpush1.msra.mxu0 0.0
    %313 = vmatprep.subr.mxu0 0.0
    %314 = vmatpush1.msra.mxu0 0.0
    %315 = vmatprep.subr.mxu0 0.0
    %316 = vmatpush1.msra.mxu0 0.0
    %317 = vmatprep.subr.mxu0 0.0
    %318 = vmatpush1.msra.mxu0 0.0
    %319 = vmatprep.subr.mxu0 0.0
    %320 = vmatpush1.msra.mxu0 0.0
    %321 = vmatprep.subr.mxu0 0.0
    %322 = vmatpush1.msra.mxu0 0.0
    %323 = vmatprep.subr.mxu0 0.0
    %324 = vmatpush1.msra.mxu0 0.0
    %325 = vmatprep.subr.mxu0 0.0
    %326 = vmatpush1.msra.mxu0 0.0
    %327 = vmatprep.subr.mxu0 0.0
    %328 = vmatpush1.msra.mxu0 0.0
    %329 = vmatprep.subr.mxu0 0.0
    %330 = vmatpush1.msra.mxu0 0.0
    %331 = vmatprep.subr.mxu0 0.0
    %332 = vmatpush1.msra.mxu0 0.0
    %333 = vmatprep.subr.mxu0 0.0
    %334 = vmatpush1.msra.mxu0 0.0
    %335 = vmatprep.subr.mxu0 0.0
    %336 = vmatpush1.msra.mxu0 0.0
    %337 = vmatprep.subr.mxu0 0.0
    %338 = vmatpush1.msra.mxu0 0.0
    %339 = vmatprep.subr.mxu0 0.0
    %340 = vmatpush1.msra.mxu0 0.0
    %341 = vmatprep.subr.mxu0 0.0
    %342 = vmatpush1.msra.mxu0 0.0
    %343 = vmatprep.subr.mxu0 0.0
    %344 = vmatpush1.msra.mxu0 0.0
    %345 = vmatprep.mubr.f32.mxu0 0.0
    %346 = vmatmul.mubr.f32.gmra.mrb[0].mxu0 %v279
    %v347 = vpop.f32.mrb[0].mxu0
    %v348 = vadd.f32 0.0, %v347
    %v349 = vpop.f32.mrb[0].mxu0
    %350 = vdwg.mxu0
    %351 = vrot.lane.b32.xlu0 %v93, 96
    %v352 = vpop.permute.xlu0 %351
    %v355 = vsel %vm252, %v274, 0
    %357 = vmatprep.subr.mxu0 0.0
    %358 = vmatpush1.msra.mxu0 %v352
    %359 = vmatprep.subr.mxu0 0.0
    %360 = vmatpush1.msra.mxu0 0.0
    %361 = vmatprep.subr.mxu0 0.0
    %362 = vmatpush1.msra.mxu0 0.0
    %363 = vmatprep.subr.mxu0 0.0
    %364 = vmatpush1.msra.mxu0 0.0
    %365 = vmatprep.subr.mxu0 0.0
    %366 = vmatpush1.msra.mxu0 0.0
    %367 = vmatprep.subr.mxu0 0.0
    %368 = vmatpush1.msra.mxu0 0.0
    %369 = vmatprep.subr.mxu0 0.0
    %370 = vmatpush1.msra.mxu0 0.0
    %371 = vmatprep.subr.mxu0 0.0
    %372 = vmatpush1.msra.mxu0 0.0
    %373 = vmatprep.subr.mxu0 0.0
    %374 = vmatpush1.msra.mxu0 0.0
    %375 = vmatprep.subr.mxu0 0.0
    %376 = vmatpush1.msra.mxu0 0.0
    %377 = vmatprep.subr.mxu0 0.0
    %378 = vmatpush1.msra.mxu0 0.0
    %379 = vmatprep.subr.mxu0 0.0
    %380 = vmatpush1.msra.mxu0 0.0
    %381 = vmatprep.subr.mxu0 0.0
    %382 = vmatpush1.msra.mxu0 0.0
    %383 = vmatprep.subr.mxu0 0.0
    %384 = vmatpush1.msra.mxu0 0.0
    %385 = vmatprep.subr.mxu0 0.0
    %386 = vmatpush1.msra.mxu0 0.0
    %387 = vmatprep.subr.mxu0 0.0
    %388 = vmatpush1.msra.mxu0 0.0
    %389 = vmatprep.subr.mxu0 0.0
    %390 = vmatpush1.msra.mxu0 0.0
    %391 = vmatprep.subr.mxu0 0.0
    %392 = vmatpush1.msra.mxu0 0.0
    %393 = vmatprep.subr.mxu0 0.0
    %394 = vmatpush1.msra.mxu0 0.0
    %395 = vmatprep.subr.mxu0 0.0
    %396 = vmatpush1.msra.mxu0 0.0
    %397 = vmatprep.subr.mxu0 0.0
    %398 = vmatpush1.msra.mxu0 0.0
    %399 = vmatprep.subr.mxu0 0.0
    %400 = vmatpush1.msra.mxu0 0.0
    %401 = vmatprep.subr.mxu0 0.0
    %402 = vmatpush1.msra.mxu0 0.0
    %403 = vmatprep.subr.mxu0 0.0
    %404 = vmatpush1.msra.mxu0 0.0
    %405 = vmatprep.subr.mxu0 0.0
    %406 = vmatpush1.msra.mxu0 0.0
    %407 = vmatprep.subr.mxu0 0.0
    %408 = vmatpush1.msra.mxu0 0.0
    %409 = vmatprep.subr.mxu0 0.0
    %410 = vmatpush1.msra.mxu0 0.0
    %411 = vmatprep.subr.mxu0 0.0
    %412 = vmatpush1.msra.mxu0 0.0
    %413 = vmatprep.subr.mxu0 0.0
    %414 = vmatpush1.msra.mxu0 0.0
    %415 = vmatprep.subr.mxu0 0.0
    %416 = vmatpush1.msra.mxu0 0.0
    %417 = vmatprep.subr.mxu0 0.0
    %418 = vmatpush1.msra.mxu0 0.0
    %419 = vmatprep.subr.mxu0 0.0
    %420 = vmatpush1.msra.mxu0 0.0
    %421 = vmatprep.mubr.f32.mxu0 0.0
    %422 = vmatmul.mubr.f32.gmra.mrb[0].mxu0 %v355
    %v423 = vpop.f32.mrb[0].mxu0
    %v424 = vadd.f32 0.0, %v423
    %v425 = vpop.f32.mrb[0].mxu0
    %426 = vdwg.mxu0
    %427 = vst.msk [vmem:[#allocation2] sm:$0xff] %vm100, %v348
    %428 = vst.msk [vmem:[#allocation2 + $0x8] sm:$0xff] %vm100, %v424
    // Predicated region
    $region14: #{tpu_custom_call.1} parent=1 // pred_check
      _
    $region15: #{tpu_custom_call.1} parent=1 // pred_check_branch
      %430 = sbr.rel (0) target = $region17
    $region16: #{tpu_custom_call.1} parent=1 // pred_region
      %s432 = ssub.s32 256, 256
      %433 = vsyncadd [#allocation3], %s432
      %s434 = sshll.u32 [#allocation2], 4
      %s435 = int_to_ptr.vmem [resolvable:$true] %s434
      %440 = dma.vmem_to_hbm [thread:$0]  %s435, 256, %s3, [#allocation3], 128, 128, 8
    $region17: #{tpu_custom_call.1} parent=1 // pred_fallthru
      _
    // Predicated region
    $region18: #{tpu_custom_call.1} parent=1 // pred_check
      _
    $region19: #{tpu_custom_call.1} parent=1 // pred_check_branch
      %442 = sbr.rel (0) target = $region21
    $region20: #{tpu_custom_call.1} parent=1 // pred_region
      %443 = dma.done [#allocation3], 256
    $region21: #{tpu_custom_call.1} parent=1 // pred_fallthru
      _
    %444 = vsyncpa [#allocation3], 1

</llo_original>
